<compile_context>
chip_gen: v6e
topology: v6e:2x2x1
jax: 0.10.0
libtpu: 0.0.40
codegen_flags: <defaults>
</compile_context>

<pallas_src>
import math

import jax
import jax.numpy as jnp
from jax.experimental import pallas as pl
from jax.experimental.pallas import tpu as pltpu

_INV_SQRT2 = 1.0 / math.sqrt(2.0)


def _gelu_exact(v):
    # Matches torch.nn.GELU() default (exact, erf-based).
    return 0.5 * v * (1.0 + jax.lax.erf(v * _INV_SQRT2))


def _postblock_kernel(pT_ref, w1_ref, b1_ref, w2_ref, b2_ref, o_ref):
    # pT_ref: (KKCp, L)   bf16  GELU'd transposed im2col patches,
    #                           lane = n*H*W + h*W + w  (L multiple of 128)
    # w1_ref: (Cin, KKCp) bf16  conv1 folded to a single matmul LHS
    # b1_ref: (Cin, 1)    f32
    # w2_ref: (Cout, Cin) f32   1x1 transposed conv == channel matmul
    # b2_ref: (Cout, 1)   f32
    # o_ref : (Cout, L)         lane-dense, unmasked stores
    # conv1: one MXU push (bf16 operands, f32 accumulation).
    h = jnp.dot(w1_ref[...], pT_ref[...], preferred_element_type=jnp.float32)
    h = _gelu_exact(h + b1_ref[...])                     # act1, f32, (Cin, L)
    # conv2: tiny pointwise channel matmul (kept f32; no extra rounding of h).
    y = jnp.dot(w2_ref[...], h, preferred_element_type=jnp.float32)
    o_ref[...] = (y + b2_ref[...]).astype(o_ref.dtype)


def _pick_lane_tile(total):
    # Largest multiple of 128 that divides `total`, capped at 1024 lanes so a
    # double-buffered patch block stays ~100 KB (well under v7x's 64 MiB VMEM).
    for cand in range(1024, 127, -128):
        if cand <= total and total % cand == 0:
            return cand
    return 128


def postblock_forward(x_nchw, w1_t, b1, w2_t, b2, kernel_size):
    """x_nchw: (N, Cin, H, W); w1_t: (Cin, Cin, K, K) ConvTranspose2d weight;
    w2_t: (Cin, Cout, 1, 1); returns (N, Cout, H, W)."""
    K = kernel_size
    if K % 2 == 0 or K < 3:
        # For K=1 the equivalent-conv padding would be negative and for even K a
        # stride-1 ConvTranspose2d changes the spatial size; both need a
        # different output shape, so refuse rather than silently be wrong.
        raise NotImplementedError("postblock_forward requires odd kernel_size >= 3")
    p = max(1, K // 2)
    pad = K - 1 - p                                      # equivalent-conv padding (== K//2)
    N, Cin, H, W = x_nchw.shape
    Cout = w2_t.shape[1]
    HW = H * W
    KKC = K * K * Cin
    KKCp = -(-KKC // 16) * 16                            # sublane-align contraction dim (bf16)

    # ---- wrapper-side layout plumbing (fused by XLA into one producer) -----
    # act0 ONCE on the raw input (not on the 9x-expanded patches), then zero-pad
    # spatially (exactly what the equivalent conv's zero padding sees).
    xg = _gelu_exact(x_nchw.astype(jnp.float32))
    xp = jnp.pad(xg, ((0, 0), (0, 0), (pad, pad), (pad, pad)))
    # Transposed im2col with batch folded into the lane axis:
    #   patches_t[(kh*K+kw)*Cin + c, n*HW + h*W + w] = xp[n, c, h+kh, w+kw]
    taps = [xp[:, :, kh:kh + H, kw:kw + W] for kh in range(K) for kw in range(K)]
    patches_t = jnp.transpose(jnp.stack(taps, axis=0), (0, 2, 1, 3, 4)).reshape(KKC, N * HW)
    patches_t = jnp.pad(patches_t, ((0, KKCp - KKC), (0, 0))).astype(jnp.bfloat16)

    total = N * HW
    total_p = -(-total // 128) * 128                     # lane-pad for odd spatial sizes
    if total_p != total:
        patches_t = jnp.pad(patches_t, ((0, 0), (0, total_p - total)))
    L = _pick_lane_tile(total_p)
    grid = (total_p // L,)

    # ConvTranspose weight -> equivalent-conv per-tap weights, flattened so
    # conv1 becomes a single (Cin, KKCp) @ (KKCp, L) matmul per grid step.
    w1_conv = jnp.transpose(w1_t[:, :, ::-1, ::-1], (2, 3, 0, 1))        # (K, K, Cin_in, Cin_out)
    w1_mat = jnp.transpose(w1_conv, (3, 0, 1, 2)).reshape(Cin, KKC)      # (Cin_out, K*K*Cin_in)
    w1_mat = jnp.pad(w1_mat, ((0, 0), (0, KKCp - KKC))).astype(jnp.bfloat16)
    w2_mat = w2_t[:, :, 0, 0].T.astype(jnp.float32)                      # (Cout, Cin)

    bytes_accessed = (patches_t.size * 2 + w1_mat.size * 2 + w2_mat.size * 4
                      + (Cin + Cout) * 4 + Cout * total_p * x_nchw.dtype.itemsize)
    cost = pl.CostEstimate(
        flops=2 * (Cin * KKC + Cout * Cin) * total,
        transcendentals=Cin * total,                     # in-kernel act1 (erf)
        bytes_accessed=int(bytes_accessed))

    out_flat = pl.pallas_call(
        _postblock_kernel,
        out_shape=jax.ShapeDtypeStruct((Cout, total_p), x_nchw.dtype),
        grid=grid,
        in_specs=[
            pl.BlockSpec((KKCp, L), lambda i: (0, i)),
            pl.BlockSpec((Cin, KKCp), lambda i: (0, 0)),
            pl.BlockSpec((Cin, 1), lambda i: (0, 0)),
            pl.BlockSpec((Cout, Cin), lambda i: (0, 0)),
            pl.BlockSpec((Cout, 1), lambda i: (0, 0)),
        ],
        out_specs=pl.BlockSpec((Cout, L), lambda i: (0, i)),
        compiler_params=pltpu.CompilerParams(
            dimension_semantics=("parallel",)),          # lane tiles split across TCs on v7x
        cost_estimate=cost,
    )(patches_t, w1_mat,
      b1.reshape(Cin, 1).astype(jnp.float32),
      w2_mat,
      b2.reshape(Cout, 1).astype(jnp.float32))

    # (Cout, N*H*W) -> (N, Cout, H, W); only a tiny transpose on the small output.
    return out_flat[:, :total].reshape(Cout, N, H, W).transpose(1, 0, 2, 3)


def _reference_forward(x_nchw, w1_t, b1, w2_t, b2, kernel_size):
    """Pure-JAX (XLA conv) reference with the same bf16-operand conv1 / f32 accumulation."""
    K = kernel_size
    p = max(1, K // 2)
    pad = K - 1 - p
    x = jnp.transpose(x_nchw, (0, 2, 3, 1))
    xg = _gelu_exact(x.astype(jnp.float32)).astype(jnp.bfloat16)
    w1c = jnp.transpose(w1_t[:, :, ::-1, ::-1], (2, 3, 0, 1)).astype(jnp.bfloat16)  # HWIO
    y1 = jax.lax.conv_general_dilated(
        xg, w1c, window_strides=(1, 1),
        padding=[(pad, pad), (pad, pad)],
        dimension_numbers=("NHWC", "HWIO", "NHWC"),
        preferred_element_type=jnp.float32) + b1
    y1 = _gelu_exact(y1)
    y2 = jnp.einsum("nhwc,co->nhwo", y1, w2_t[:, :, 0, 0]) + b2
    return jnp.transpose(y2, (0, 3, 1, 2))


if __name__ == "__main__":
    # FusedMBConvConfig-like setup: kernel=3, input_channels=4, out_channels=8
    N, Cin, H, W = 2, 4, 16, 16
    Cout, K = 8, 3

    key = jax.random.PRNGKey(0)
    k0, k1, k2, k3, k4 = jax.random.split(key, 5)
    x = jax.random.normal(k0, (N, Cin, H, W), jnp.float32)
    # deterministic synthetic parameters (ConvTranspose2d layouts)
    w1_t = 0.2 * jax.random.normal(k1, (Cin, Cin, K, K), jnp.float32)
    b1 = 0.1 * jax.random.normal(k2, (Cin,), jnp.float32)
    w2_t = 0.2 * jax.random.normal(k3, (Cin, Cout, 1, 1), jnp.float32)
    b2 = 0.1 * jax.random.normal(k4, (Cout,), jnp.float32)

    out = postblock_forward(x, w1_t, b1, w2_t, b2, K)
    out = jax.block_until_ready(out)

    ref = _reference_forward(x, w1_t, b1, w2_t, b2, K)
    assert out.shape == (N, Cout, H, W), out.shape
    assert jnp.allclose(out, ref, atol=1e-3, rtol=1e-3), float(
        jnp.max(jnp.abs(out - ref)))

    print("KERNEL_OK")
</pallas_src>

<mosaic_0001>
module attributes {stable_mosaic.version = 11 : i64} {
  func.func @_postblock_kernel(%arg0: i32, %arg1: memref<48x512xbf16, #tpu.memory_space<vmem>>, %arg2: memref<4x48xbf16, #tpu.memory_space<vmem>>, %arg3: memref<4x1xf32, #tpu.memory_space<vmem>>, %arg4: memref<8x4xf32, #tpu.memory_space<vmem>>, %arg5: memref<8x1xf32, #tpu.memory_space<vmem>>, %arg6: memref<8x512xf32, #tpu.memory_space<vmem>>) attributes {dimension_semantics = [#tpu.dimension_semantics<parallel>], iteration_bounds = array<i64: 1>, scalar_prefetch = 0 : i64, scratch_operands = 0 : i64, tpu.core_type = #tpu.core_type<tc>, window_params = [{transform_indices = @transform_0, window_bounds = array<i64: 48, 512>}, {pipeline_mode = #tpu.pipeline_mode<synchronous>, transform_indices = @transform_1, window_bounds = array<i64: 4, 48>}, {pipeline_mode = #tpu.pipeline_mode<synchronous>, transform_indices = @transform_2, window_bounds = array<i64: 4, 1>}, {pipeline_mode = #tpu.pipeline_mode<synchronous>, transform_indices = @transform_3, window_bounds = array<i64: 8, 4>}, {pipeline_mode = #tpu.pipeline_mode<synchronous>, transform_indices = @transform_4, window_bounds = array<i64: 8, 1>}, {transform_indices = @transform_5, window_bounds = array<i64: 8, 512>}]} {
    %c0 = arith.constant 0 : index
    %c0_0 = arith.constant 0 : index
    %0 = vector.load %arg2[%c0, %c0_0] : memref<4x48xbf16, #tpu.memory_space<vmem>>, vector<4x48xbf16>
    %c0_1 = arith.constant 0 : index
    %c0_2 = arith.constant 0 : index
    %1 = vector.load %arg1[%c0_1, %c0_2] : memref<48x512xbf16, #tpu.memory_space<vmem>>, vector<48x512xbf16>
    %cst = arith.constant dense<0.000000e+00> : vector<4x512xf32>
    %2 = tpu.matmul %0, %1, %cst {dimension_numbers = #tpu.dot_dimension_numbers<[1], [0], [0], [1], [0, 0, 1, 1], [], []>} : vector<4x48xbf16>, vector<48x512xbf16>, vector<4x512xf32> -> vector<4x512xf32>
    %c0_3 = arith.constant 0 : index
    %c0_4 = arith.constant 0 : index
    %3 = vector.load %arg3[%c0_3, %c0_4] : memref<4x1xf32, #tpu.memory_space<vmem>>, vector<4x1xf32>
    %4 = vector.broadcast %3 : vector<4x1xf32> to vector<4x512xf32>
    %5 = arith.addf %2, %4 : vector<4x512xf32>
    %cst_5 = arith.constant 5.000000e-01 : f32
    %6 = vector.broadcast %cst_5 : f32 to vector<4x512xf32>
    %7 = arith.mulf %6, %5 : vector<4x512xf32>
    %cst_6 = arith.constant 0.707106769 : f32
    %8 = vector.broadcast %cst_6 : f32 to vector<4x512xf32>
    %9 = arith.mulf %5, %8 : vector<4x512xf32>
    %10 = math.erf %9 : vector<4x512xf32>
    %cst_7 = arith.constant 1.000000e+00 : f32
    %11 = vector.broadcast %cst_7 : f32 to vector<4x512xf32>
    %12 = arith.addf %11, %10 : vector<4x512xf32>
    %13 = arith.mulf %7, %12 : vector<4x512xf32>
    %c0_8 = arith.constant 0 : index
    %c0_9 = arith.constant 0 : index
    %14 = vector.load %arg4[%c0_8, %c0_9] : memref<8x4xf32, #tpu.memory_space<vmem>>, vector<8x4xf32>
    %cst_10 = arith.constant dense<0.000000e+00> : vector<8x512xf32>
    %15 = tpu.matmul %14, %13, %cst_10 {dimension_numbers = #tpu.dot_dimension_numbers<[1], [0], [0], [1], [0, 0, 1, 1], [], []>} : vector<8x4xf32>, vector<4x512xf32>, vector<8x512xf32> -> vector<8x512xf32>
    %c0_11 = arith.constant 0 : index
    %c0_12 = arith.constant 0 : index
    %16 = vector.load %arg5[%c0_11, %c0_12] : memref<8x1xf32, #tpu.memory_space<vmem>>, vector<8x1xf32>
    %17 = vector.broadcast %16 : vector<8x1xf32> to vector<8x512xf32>
    %18 = arith.addf %15, %17 : vector<8x512xf32>
    %c0_13 = arith.constant 0 : index
    %c0_14 = arith.constant 0 : index
    %19 = vector.load %arg6[%c0_13, %c0_14] : memref<8x512xf32, #tpu.memory_space<vmem>>, vector<8x512xf32>
    tpu.vector_store %arg6[%c0_13, %c0_14], %18 {strides = array<i32>} : memref<8x512xf32, #tpu.memory_space<vmem>>, vector<8x512xf32>,
    return
  }
  func.func @transform_0(%arg0: i32) -> (i32, i32) {
    %c0_i32 = arith.constant 0 : i32
    %c0_i32_0 = arith.constant 0 : i32
    return %c0_i32, %arg0 : i32, i32
  }
  func.func @transform_1(%arg0: i32) -> (i32, i32) {
    %c0_i32 = arith.constant 0 : i32
    %c0_i32_0 = arith.constant 0 : i32
    %c0_i32_1 = arith.constant 0 : i32
    return %c0_i32, %c0_i32_0 : i32, i32
  }
  func.func @transform_2(%arg0: i32) -> (i32, i32) {
    %c0_i32 = arith.constant 0 : i32
    %c0_i32_0 = arith.constant 0 : i32
    %c0_i32_1 = arith.constant 0 : i32
    return %c0_i32, %c0_i32_0 : i32, i32
  }
  func.func @transform_3(%arg0: i32) -> (i32, i32) {
    %c0_i32 = arith.constant 0 : i32
    %c0_i32_0 = arith.constant 0 : i32
    %c0_i32_1 = arith.constant 0 : i32
    return %c0_i32, %c0_i32_0 : i32, i32
  }
  func.func @transform_4(%arg0: i32) -> (i32, i32) {
    %c0_i32 = arith.constant 0 : i32
    %c0_i32_0 = arith.constant 0 : i32
    %c0_i32_1 = arith.constant 0 : i32
    return %c0_i32, %c0_i32_0 : i32, i32
  }
  func.func @transform_5(%arg0: i32) -> (i32, i32) {
    %c0_i32 = arith.constant 0 : i32
    %c0_i32_0 = arith.constant 0 : i32
    return %c0_i32, %arg0 : i32, i32
  }
}

</mosaic_0001>

<llo_original>
// kernel: tpu_custom_call.1
$region0: #{tpu_custom_call.1}
  #allocation0 [shape = 'u32[]', space=smem, size = 0x4, offset = 0x4, fixed_abs, tag = 'smem constant byte address 0x4 - core index']
  #allocation1 [shape = 'u32[144,128]{1,0:T(1,128)}', space=vmem, size = 0x12000, scoped, tag = 'internal scratch']
  %s0 = inlined_call_operand.hbm [shape: bf16[48,512], index: 0, kind: input, shape index: {}]
  %s1 = inlined_call_operand.vmem [shape: bf16[4,48], index: 1, kind: input, shape index: {}]
  %s2 = inlined_call_operand.vmem [shape: f32[4,1], index: 2, kind: input, shape index: {}]
  %s3 = inlined_call_operand.vmem [shape: f32[8,4], index: 3, kind: input, shape index: {}]
  %s4 = inlined_call_operand.vmem [shape: f32[8,1], index: 4, kind: input, shape index: {}]
  %s5 = inlined_call_operand.hbm [shape: f32[8,512], index: 5, kind: output, shape index: {}]
  %s6 = sld [smem:[#allocation0]]
  $region34: #{tpu_custom_call.1} parent=0
    _
  %s8 = ssub.s32 1, %s6
  %s9 = scalar_select 0, %s8, %s6
  $region1: #{tpu_custom_call.1} parent=0
    #allocation2 [shape = 'u8[49152]{0}', space=vmem, size = 0xc000, scoped, tag = 'input window, operand 0, single buffered']
    #allocation3 [shape = 's32[1]{0}', space=sflag, size = 0x4, scoped, tag = 'scoped memory for tpu_custom_call.1']
    #allocation4 [shape = 's32[1]{0}', space=sflag, size = 0x4, scoped, tag = 'scoped memory for tpu_custom_call.1']
    #allocation5 [shape = 'u8[16384]{0}', space=vmem, size = 0x4000, scoped, tag = 'output window, operand 0, single buffered']
    %10 = vsyncpa [#allocation3], 0
    %11 = vsyncpa [#allocation4], 0
    // Predicated region
    $region2: #{tpu_custom_call.1} parent=1 // pred_check
      _
    $region3: #{tpu_custom_call.1} parent=1 // pred_check_branch
      %13 = sbr.rel (0) target = $region5
    $region4: #{tpu_custom_call.1} parent=1 // pred_region
      %s15 = ssub.s32 1536, 1536
      %16 = vsyncadd [#allocation3], %s15
      %s17 = sshll.u32 [#allocation2], 4
      %s18 = int_to_ptr.vmem [resolvable:$true] %s17
      %23 = dma.hbm_to_vmem [thread:$0]  %s0, 1536, %s18, [#allocation3], 256, 256, 16
    $region5: #{tpu_custom_call.1} parent=1 // pred_fallthru
      _
    // Predicated region
    $region6: #{tpu_custom_call.1} parent=1 // pred_check
      _
    $region7: #{tpu_custom_call.1} parent=1 // pred_check_branch
      %25 = sbr.rel (0) target = $region9
    $region8: #{tpu_custom_call.1} parent=1 // pred_region
      _
    $region9: #{tpu_custom_call.1} parent=1 // pred_fallthru
      _
    // Predicated region
    $region10: #{tpu_custom_call.1} parent=1 // pred_check
      _
    $region11: #{tpu_custom_call.1} parent=1 // pred_check_branch
      %27 = sbr.rel (0) target = $region13
    $region12: #{tpu_custom_call.1} parent=1 // pred_region
      _
    $region13: #{tpu_custom_call.1} parent=1 // pred_fallthru
      _
    // Predicated region
    $region14: #{tpu_custom_call.1} parent=1 // pred_check
      _
    $region15: #{tpu_custom_call.1} parent=1 // pred_check_branch
      %29 = sbr.rel (0) target = $region17
    $region16: #{tpu_custom_call.1} parent=1 // pred_region
      _
    $region17: #{tpu_custom_call.1} parent=1 // pred_fallthru
      _
    // Predicated region
    $region18: #{tpu_custom_call.1} parent=1 // pred_check
      _
    $region19: #{tpu_custom_call.1} parent=1 // pred_check_branch
      %31 = sbr.rel (0) target = $region21
    $region20: #{tpu_custom_call.1} parent=1 // pred_region
      _
    $region21: #{tpu_custom_call.1} parent=1 // pred_fallthru
      _
    // Predicated region
    $region22: #{tpu_custom_call.1} parent=1 // pred_check
      _
    $region23: #{tpu_custom_call.1} parent=1 // pred_check_branch
      %33 = sbr.rel (0) target = $region25
    $region24: #{tpu_custom_call.1} parent=1 // pred_region
      %34 = dma.done [#allocation3], 1536
    $region25: #{tpu_custom_call.1} parent=1 // pred_fallthru
      _
    %v36 = vld [vmem:[%s1] sm:$0x3]
    %v37 = vld [vmem:[#allocation2] sm:$0xff]
    %v38 = vld [vmem:[#allocation2 + $0x8] sm:$0xff]
    %v39 = vld [vmem:[#allocation2 + $0x10] sm:$0xff]
    %v40 = vld [vmem:[#allocation2 + $0x18] sm:$0xff]
    %v41 = vld [vmem:[#allocation2 + $0x20] sm:$0xff]
    %v42 = vld [vmem:[#allocation2 + $0x28] sm:$0xff]
    %v43 = vld [vmem:[#allocation2 + $0x30] sm:$0xff]
    %v44 = vld [vmem:[#allocation2 + $0x38] sm:$0xff]
    %v45 = vld [vmem:[#allocation2 + $0x40] sm:$0xff]
    %v46 = vld [vmem:[#allocation2 + $0x48] sm:$0xff]
    %v47 = vld [vmem:[#allocation2 + $0x50] sm:$0xff]
    %v48 = vld [vmem:[#allocation2 + $0x58] sm:$0xff]
    %v49 = vld [vmem:[%s2] sm:$0xf]
    %51 = vset.pattern.permute.xlu0 0
    %52 = vperm.xlu0 %51, %v49
    %v53 = vpop.permute.xlu0 %52
    %v67 = vunpack.c.l.b16 %v37
    %v68 = vunpack.c.h.b16 %v37
    %v69 = vunpack.c.l.b16 %v38
    %v70 = vunpack.c.h.b16 %v38
    %v71 = vunpack.c.l.b16 %v39
    %v72 = vunpack.c.h.b16 %v39
    %v73 = vunpack.c.l.b16 %v40
    %v74 = vunpack.c.h.b16 %v40
    %v75 = vunpack.c.l.b16 %v41
    %v76 = vunpack.c.h.b16 %v41
    %v77 = vunpack.c.l.b16 %v42
    %v78 = vunpack.c.h.b16 %v42
    %v79 = vunpack.c.l.b16 %v43
    %v80 = vunpack.c.h.b16 %v43
    %v81 = vunpack.c.l.b16 %v44
    %v82 = vunpack.c.h.b16 %v44
    %v83 = vunpack.c.l.b16 %v45
    %v84 = vunpack.c.h.b16 %v45
    %v85 = vunpack.c.l.b16 %v46
    %v86 = vunpack.c.h.b16 %v46
    %v87 = vunpack.c.l.b16 %v47
    %v88 = vunpack.c.h.b16 %v47
    %v89 = vunpack.c.l.b16 %v48
    %v90 = vunpack.c.h.b16 %v48
    %v91 = vpack.c.b16 %v71, %v67
    %v92 = vpack.c.b16 %v72, %v68
    %v93 = vpack.c.b16 %v73, %v69
    %v94 = vpack.c.b16 %v74, %v70
    %v95 = vpack.c.b16 %v79, %v75
    %v96 = vpack.c.b16 %v80, %v76
    %v97 = vpack.c.b16 %v81, %v77
    %v98 = vpack.c.b16 %v82, %v78
    %v99 = vpack.c.b16 %v87, %v83
    %v100 = vpack.c.b16 %v88, %v84
    %v101 = vpack.c.b16 %v89, %v85
    %v102 = vpack.c.b16 %v90, %v86
    %vm115 = vcmask 392192
    %v117 = vsel %vm115, %v36, 0
    %119 = vmatprep.subr.bf16.mxu0 0
    %120 = vmatpush1.bf16.msra.mxu0 0
    %121 = vmatprep.subr.bf16.mxu0 0
    %122 = vmatpush1.bf16.msra.mxu0 0
    %123 = vmatprep.subr.bf16.mxu0 0
    %124 = vmatpush1.bf16.msra.mxu0 0
    %125 = vmatprep.subr.bf16.mxu0 0
    %126 = vmatpush1.bf16.msra.mxu0 0
    %127 = vmatprep.subr.bf16.mxu0 0
    %128 = vmatpush1.bf16.msra.mxu0 0
    %129 = vmatprep.subr.bf16.mxu0 %v100
    %130 = vmatpush1.bf16.msra.mxu0 %v99
    %131 = vmatprep.subr.bf16.mxu0 %v96
    %132 = vmatpush1.bf16.msra.mxu0 %v95
    %133 = vmatprep.subr.bf16.mxu0 %v92
    %134 = vmatpush1.bf16.msra.mxu0 %v91
    %135 = vmatprep.subr.bf16.mxu0 0
    %136 = vmatpush2.bf16.msra.mxu0 0
    %137 = vmatprep.subr.bf16.mxu0 0
    %138 = vmatpush2.bf16.msra.mxu0 0
    %139 = vmatprep.subr.bf16.mxu0 0
    %140 = vmatpush2.bf16.msra.mxu0 0
    %141 = vmatprep.subr.bf16.mxu0 0
    %142 = vmatpush2.bf16.msra.mxu0 0
    %143 = vmatprep.subr.bf16.mxu0 0
    %144 = vmatpush2.bf16.msra.mxu0 0
    %145 = vmatprep.subr.bf16.mxu0 0
    %146 = vmatpush2.bf16.msra.mxu0 0
    %147 = vmatprep.subr.bf16.mxu0 0
    %148 = vmatpush2.bf16.msra.mxu0 0
    %149 = vmatprep.subr.bf16.mxu0 0
    %150 = vmatpush2.bf16.msra.mxu0 0
    %151 = vmatprep.mubr.bf16.mxu0 0
    %152 = vmatmul.mubr.bf16.gmra.mxu0 %v117
    %v153 = vpop.f32.mrf.mxu0
    %v154 = vadd.f32 %v53, %v153
    %v155 = vpop.f32.mrf.mxu0
    %v156 = vadd.f32 %v53, %v155
    %v157 = vpop.f32.mrf.mxu0
    %v158 = vpop.f32.mrf.mxu0
    %159 = vdwg.mxu0
    %160 = vmatprep.subr.bf16.mxu0 0
    %161 = vmatpush1.bf16.msra.mxu0 0
    %162 = vmatprep.subr.bf16.mxu0 0
    %163 = vmatpush1.bf16.msra.mxu0 0
    %164 = vmatprep.subr.bf16.mxu0 0
    %165 = vmatpush1.bf16.msra.mxu0 0
    %166 = vmatprep.subr.bf16.mxu0 0
    %167 = vmatpush1.bf16.msra.mxu0 0
    %168 = vmatprep.subr.bf16.mxu0 0
    %169 = vmatpush1.bf16.msra.mxu0 0
    %170 = vmatprep.subr.bf16.mxu0 %v102
    %171 = vmatpush1.bf16.msra.mxu0 %v101
    %172 = vmatprep.subr.bf16.mxu0 %v98
    %173 = vmatpush1.bf16.msra.mxu0 %v97
    %174 = vmatprep.subr.bf16.mxu0 %v94
    %175 = vmatpush1.bf16.msra.mxu0 %v93
    %176 = vmatprep.subr.bf16.mxu0 0
    %177 = vmatpush2.bf16.msra.mxu0 0
    %178 = vmatprep.subr.bf16.mxu0 0
    %179 = vmatpush2.bf16.msra.mxu0 0
    %180 = vmatprep.subr.bf16.mxu0 0
    %181 = vmatpush2.bf16.msra.mxu0 0
    %182 = vmatprep.subr.bf16.mxu0 0
    %183 = vmatpush2.bf16.msra.mxu0 0
    %184 = vmatprep.subr.bf16.mxu0 0
    %185 = vmatpush2.bf16.msra.mxu0 0
    %186 = vmatprep.subr.bf16.mxu0 0
    %187 = vmatpush2.bf16.msra.mxu0 0
    %188 = vmatprep.subr.bf16.mxu0 0
    %189 = vmatpush2.bf16.msra.mxu0 0
    %190 = vmatprep.subr.bf16.mxu0 0
    %191 = vmatpush2.bf16.msra.mxu0 0
    %192 = vmatprep.mubr.bf16.mxu0 0
    %193 = vmatmul.mubr.bf16.gmra.mxu0 %v117
    %v194 = vpop.f32.mrf.mxu0
    %v195 = vadd.f32 %v53, %v194
    %v196 = vpop.f32.mrf.mxu0
    %v197 = vadd.f32 %v53, %v196
    %v198 = vpop.f32.mrf.mxu0
    %v199 = vpop.f32.mrf.mxu0
    %200 = vdwg.mxu0
    %v201 = vmul.f32 %v154, 0.5
    %v202 = vmul.f32 %v156, 0.5
    %v203 = vmul.f32 %v195, 0.5
    %v204 = vmul.f32 %v197, 0.5
    %v205 = vmul.f32 %v154, 0.70710677
    %v206 = vmul.f32 %v156, 0.70710677
    %v207 = vmul.f32 %v195, 0.70710677
    %v208 = vmul.f32 %v197, 0.70710677
    %v209 = verf.f32.pop %v205
    %v210 = verf.f32.pop %v206
    %v211 = verf.f32.pop %v207
    %v212 = verf.f32.pop %v208
    %v213 = vadd.f32 %v209, 1.0
    %v214 = vadd.f32 %v210, 1.0
    %v215 = vadd.f32 %v211, 1.0
    %v216 = vadd.f32 %v212, 1.0
    %v217 = vmul.f32 %v201, %v213
    %v218 = vmul.f32 %v202, %v214
    %v219 = vmul.f32 %v203, %v215
    %v220 = vmul.f32 %v204, %v216
    %v221 = vld [vmem:[%s3] sm:$0xff]
    %v222 = vld [vmem:[%s4] sm:$0xff]
    %224 = vset.pattern.permute.xlu0 0
    %225 = vperm.xlu0 %224, %v222
    %v226 = vpop.permute.xlu0 %225
    %vm228 = vcmask 31744
    %v230 = vsel %vm228, %v221, 0
    %vm232 = vcmask 1043456
    %v234 = vsel %vm232, %v217, 0
    %v237 = vsel %vm232, %v218, 0
    %v240 = vsel %vm232, %v219, 0
    %v243 = vsel %vm232, %v220, 0
    %245 = vmatprep.subr.mxu0 0.0
    %246 = vmatpush1.msra.mxu0 0.0
    %247 = vmatprep.subr.mxu0 0.0
    %248 = vmatpush1.msra.mxu0 0.0
    %249 = vmatprep.subr.mxu0 0.0
    %250 = vmatpush1.msra.mxu0 0.0
    %251 = vmatprep.subr.mxu0 0.0
    %252 = vmatpush1.msra.mxu0 0.0
    %253 = vmatprep.subr.mxu0 0.0
    %254 = vmatpush1.msra.mxu0 0.0
    %255 = vmatprep.subr.mxu0 0.0
    %256 = vmatpush1.msra.mxu0 0.0
    %257 = vmatprep.subr.mxu0 0.0
    %258 = vmatpush1.msra.mxu0 0.0
    %259 = vmatprep.subr.mxu0 0.0
    %260 = vmatpush1.msra.mxu0 0.0
    %261 = vmatprep.subr.mxu0 0.0
    %262 = vmatpush1.msra.mxu0 0.0
    %263 = vmatprep.subr.mxu0 0.0
    %264 = vmatpush1.msra.mxu0 0.0
    %265 = vmatprep.subr.mxu0 0.0
    %266 = vmatpush1.msra.mxu0 0.0
    %267 = vmatprep.subr.mxu0 0.0
    %268 = vmatpush1.msra.mxu0 0.0
    %269 = vmatprep.subr.mxu0 0.0
    %270 = vmatpush1.msra.mxu0 0.0
    %271 = vmatprep.subr.mxu0 0.0
    %272 = vmatpush1.msra.mxu0 0.0
    %273 = vmatprep.subr.mxu0 0.0
    %274 = vmatpush1.msra.mxu0 0.0
    %275 = vmatprep.subr.mxu0 %v237
    %276 = vmatpush1.msra.mxu0 %v234
    %277 = vmatprep.subr.mxu0 0.0
    %278 = vmatpush2.msra.mxu0 0.0
    %279 = vmatprep.subr.mxu0 0.0
    %280 = vmatpush2.msra.mxu0 0.0
    %281 = vmatprep.subr.mxu0 0.0
    %282 = vmatpush2.msra.mxu0 0.0
    %283 = vmatprep.subr.mxu0 0.0
    %284 = vmatpush2.msra.mxu0 0.0
    %285 = vmatprep.subr.mxu0 0.0
    %286 = vmatpush2.msra.mxu0 0.0
    %287 = vmatprep.subr.mxu0 0.0
    %288 = vmatpush2.msra.mxu0 0.0
    %289 = vmatprep.subr.mxu0 0.0
    %290 = vmatpush2.msra.mxu0 0.0
    %291 = vmatprep.subr.mxu0 0.0
    %292 = vmatpush2.msra.mxu0 0.0
    %293 = vmatprep.subr.mxu0 0.0
    %294 = vmatpush2.msra.mxu0 0.0
    %295 = vmatprep.subr.mxu0 0.0
    %296 = vmatpush2.msra.mxu0 0.0
    %297 = vmatprep.subr.mxu0 0.0
    %298 = vmatpush2.msra.mxu0 0.0
    %299 = vmatprep.subr.mxu0 0.0
    %300 = vmatpush2.msra.mxu0 0.0
    %301 = vmatprep.subr.mxu0 0.0
    %302 = vmatpush2.msra.mxu0 0.0
    %303 = vmatprep.subr.mxu0 0.0
    %304 = vmatpush2.msra.mxu0 0.0
    %305 = vmatprep.subr.mxu0 0.0
    %306 = vmatpush2.msra.mxu0 0.0
    %307 = vmatprep.subr.mxu0 0.0
    %308 = vmatpush2.msra.mxu0 0.0
    %309 = vmatprep.mubr.f32.mxu0 0.0
    %310 = vmatmul.mubr.f32.gmra.mxu0 %v230
    %v311 = vpop.f32.mrf.mxu0
    %v312 = vadd.f32 %v226, %v311
    %v313 = vpop.f32.mrf.mxu0
    %v314 = vadd.f32 %v226, %v313
    %315 = vdwg.mxu0
    %316 = vmatprep.subr.mxu0 0.0
    %317 = vmatpush1.msra.mxu0 0.0
    %318 = vmatprep.subr.mxu0 0.0
    %319 = vmatpush1.msra.mxu0 0.0
    %320 = vmatprep.subr.mxu0 0.0
    %321 = vmatpush1.msra.mxu0 0.0
    %322 = vmatprep.subr.mxu0 0.0
    %323 = vmatpush1.msra.mxu0 0.0
    %324 = vmatprep.subr.mxu0 0.0
    %325 = vmatpush1.msra.mxu0 0.0
    %326 = vmatprep.subr.mxu0 0.0
    %327 = vmatpush1.msra.mxu0 0.0
    %328 = vmatprep.subr.mxu0 0.0
    %329 = vmatpush1.msra.mxu0 0.0
    %330 = vmatprep.subr.mxu0 0.0
    %331 = vmatpush1.msra.mxu0 0.0
    %332 = vmatprep.subr.mxu0 0.0
    %333 = vmatpush1.msra.mxu0 0.0
    %334 = vmatprep.subr.mxu0 0.0
    %335 = vmatpush1.msra.mxu0 0.0
    %336 = vmatprep.subr.mxu0 0.0
    %337 = vmatpush1.msra.mxu0 0.0
    %338 = vmatprep.subr.mxu0 0.0
    %339 = vmatpush1.msra.mxu0 0.0
    %340 = vmatprep.subr.mxu0 0.0
    %341 = vmatpush1.msra.mxu0 0.0
    %342 = vmatprep.subr.mxu0 0.0
    %343 = vmatpush1.msra.mxu0 0.0
    %344 = vmatprep.subr.mxu0 0.0
    %345 = vmatpush1.msra.mxu0 0.0
    %346 = vmatprep.subr.mxu0 %v243
    %347 = vmatpush1.msra.mxu0 %v240
    %348 = vmatprep.subr.mxu0 0.0
    %349 = vmatpush2.msra.mxu0 0.0
    %350 = vmatprep.subr.mxu0 0.0
    %351 = vmatpush2.msra.mxu0 0.0
    %352 = vmatprep.subr.mxu0 0.0
    %353 = vmatpush2.msra.mxu0 0.0
    %354 = vmatprep.subr.mxu0 0.0
    %355 = vmatpush2.msra.mxu0 0.0
    %356 = vmatprep.subr.mxu0 0.0
    %357 = vmatpush2.msra.mxu0 0.0
    %358 = vmatprep.subr.mxu0 0.0
    %359 = vmatpush2.msra.mxu0 0.0
    %360 = vmatprep.subr.mxu0 0.0
    %361 = vmatpush2.msra.mxu0 0.0
    %362 = vmatprep.subr.mxu0 0.0
    %363 = vmatpush2.msra.mxu0 0.0
    %364 = vmatprep.subr.mxu0 0.0
    %365 = vmatpush2.msra.mxu0 0.0
    %366 = vmatprep.subr.mxu0 0.0
    %367 = vmatpush2.msra.mxu0 0.0
    %368 = vmatprep.subr.mxu0 0.0
    %369 = vmatpush2.msra.mxu0 0.0
    %370 = vmatprep.subr.mxu0 0.0
    %371 = vmatpush2.msra.mxu0 0.0
    %372 = vmatprep.subr.mxu0 0.0
    %373 = vmatpush2.msra.mxu0 0.0
    %374 = vmatprep.subr.mxu0 0.0
    %375 = vmatpush2.msra.mxu0 0.0
    %376 = vmatprep.subr.mxu0 0.0
    %377 = vmatpush2.msra.mxu0 0.0
    %378 = vmatprep.subr.mxu0 0.0
    %379 = vmatpush2.msra.mxu0 0.0
    %380 = vmatprep.mubr.f32.mxu0 0.0
    %381 = vmatmul.mubr.f32.gmra.mxu0 %v230
    %v382 = vpop.f32.mrf.mxu0
    %v383 = vadd.f32 %v226, %v382
    %v384 = vpop.f32.mrf.mxu0
    %v385 = vadd.f32 %v226, %v384
    %386 = vdwg.mxu0
    %387 = vst [vmem:[#allocation5] sm:$0xff] %v312
    %388 = vst [vmem:[#allocation5 + $0x8] sm:$0xff] %v314
    %389 = vst [vmem:[#allocation5 + $0x10] sm:$0xff] %v383
    %390 = vst [vmem:[#allocation5 + $0x18] sm:$0xff] %v385
    // Predicated region
    $region26: #{tpu_custom_call.1} parent=1 // pred_check
      _
    $region27: #{tpu_custom_call.1} parent=1 // pred_check_branch
      %392 = sbr.rel (0) target = $region29
    $region28: #{tpu_custom_call.1} parent=1 // pred_region
      %s394 = ssub.s32 512, 512
      %395 = vsyncadd [#allocation4], %s394
      %s397 = sshll.u32 [#allocation5], 4
      %s398 = int_to_ptr.vmem [resolvable:$true] %s397
      %400 = dma.vmem_to_hbm [thread:$0]  %s398, 512, %s5, [#allocation4]
    $region29: #{tpu_custom_call.1} parent=1 // pred_fallthru
      _
    // Predicated region
    $region30: #{tpu_custom_call.1} parent=1 // pred_check
      _
    $region31: #{tpu_custom_call.1} parent=1 // pred_check_branch
      %402 = sbr.rel (0) target = $region33
    $region32: #{tpu_custom_call.1} parent=1 // pred_region
      %403 = dma.done [#allocation4], 512
    $region33: #{tpu_custom_call.1} parent=1 // pred_fallthru
      _
    %404 = vsyncpa [#allocation3], 1
    %405 = vsyncpa [#allocation4], 1

</llo_original>
